<compile_context>
chip_gen: v6e
topology: v6e:2x2x1
jax: 0.10.0
libtpu: 0.0.40
codegen_flags: <defaults>
</compile_context>

<pallas_src>
import math

import jax
import jax.numpy as jnp
from jax.experimental import pallas as pl
from jax.experimental.pallas import tpu as pltpu

LANE = 128


def _round_up(n, m):
    return ((n + m - 1) // m) * m


# ---------------------------------------------------------------------------
# Pallas kernel: one batch tile through the whole MLP, fully in VMEM.
#   x_ref  : [TB, n_in]           (native feature width, f32 or bf16)
#   w0_ref : [n_in, H_pad]        (pre-transposed, hidden padded to 128 lanes)
#   w1_ref : [H_pad, H_pad]
#   w2_ref : [H_pad, n_out]       (output NOT padded -> narrow HBM write)
#   b*_ref : [1, width]           (always f32)
#   o_ref  : [TB, n_out]          (f32)
# Matmuls accumulate in f32 via preferred_element_type; bias add / tanh stay
# f32 so the bf16 path only narrows MXU operands (safe on v5e too).
# ---------------------------------------------------------------------------
def bnn_kernel(x_ref, w0_ref, b0_ref, w1_ref, b1_ref, w2_ref, b2_ref, o_ref):
    x = x_ref[...]
    h = jnp.tanh(
        jnp.dot(x, w0_ref[...], preferred_element_type=jnp.float32) + b0_ref[...]
    )
    h = jnp.tanh(
        jnp.dot(h.astype(w1_ref.dtype), w1_ref[...],
                preferred_element_type=jnp.float32) + b1_ref[...]
    )
    out = jnp.dot(h.astype(w2_ref.dtype), w2_ref[...],
                  preferred_element_type=jnp.float32) + b2_ref[...]
    o_ref[...] = out.astype(o_ref.dtype)


# ---------------------------------------------------------------------------
# One-time parameter preparation (hoisted out of the per-call hot path).
# ---------------------------------------------------------------------------
def prepare_bnn_params(weights, biases, param_dtype=jnp.float32):
    """weights: list of [n_out, n_in] (PyTorch F.linear layout), biases [n_out].

    Returns ((w0,b0),(w1,b1),(w2,b2)):
      * weights transposed to [n_in, n_out] and stored in `param_dtype`
      * HIDDEN feature dims zero-padded to a multiple of 128 lanes
        (lane-dense VMEM activations; padded units are tanh(0)=0 and feed
        zero weights, so the math is exact)
      * the FINAL output dim is left unpadded (narrow HBM write)
      * the layer-0 input dim is left unpadded (narrow x stream)
      * biases are [1, width], always f32 (added to the f32 accumulator)."""
    n_layers = len(weights)
    prepped = []
    prev_out_pad = None
    for i, (w, b) in enumerate(zip(weights, biases)):
        n_out, n_in = w.shape
        is_last = i == n_layers - 1
        n_out_pad = n_out if is_last else _round_up(n_out, LANE)
        n_in_pad = n_in if prev_out_pad is None else prev_out_pad
        wt = jnp.transpose(w)  # [n_in, n_out]
        wt = jnp.pad(wt, ((0, n_in_pad - n_in), (0, n_out_pad - n_out)))
        bb = jnp.pad(b, (0, n_out_pad - n_out)).reshape(1, n_out_pad)
        prepped.append((wt.astype(param_dtype), bb.astype(jnp.float32)))
        prev_out_pad = n_out_pad
    return tuple(prepped)


def _pick_batch_tile(B, max_tb):
    """Batch tile: as large as max_tb allows (multiple of 8), but always at
    least 2 grid steps when B > 8 so v7x can shard across its 2 TensorCores."""
    if B <= 8:
        return B  # full-dim block; no (8,128) divisibility requirement
    tb = min(max_tb, _round_up(B, 8))
    tb = max(8, (tb // 8) * 8)
    if -(-B // tb) < 2:  # ensure >= 2 grid steps for megacore sharding
        tb = max(8, _round_up(-(-B // 2), 8))
    return tb


# ---------------------------------------------------------------------------
# Forward pass: batch-tiled pallas_call with resident (grid-invariant) weights.
# ---------------------------------------------------------------------------
def bnn_forward(x, prepped_params, *, max_tb=16384):
    """x: [B, n_in].  prepped_params from prepare_bnn_params.  Output f32."""
    B, n_in = x.shape
    (w0, b0), (w1, b1), (w2, b2) = prepped_params
    n_out = w2.shape[1]

    # bf16 path: narrow the x stream to match the prepared weight dtype so the
    # per-row HBM read is halved; all other math stays f32 inside the kernel.
    if w0.dtype == jnp.bfloat16 and x.dtype != jnp.bfloat16:
        x = x.astype(jnp.bfloat16)

    tb = _pick_batch_tile(B, max_tb)
    grid = (pl.cdiv(B, tb),)

    x_spec = pl.BlockSpec((tb, n_in), lambda i: (i, 0))
    out_spec = pl.BlockSpec((tb, n_out), lambda i: (i, 0))

    # Weights/biases: same block every grid step -> DMA'd once, VMEM-resident.
    def const_spec(arr):
        return pl.BlockSpec(arr.shape, lambda i: (0, 0))

    # Advisory cost estimate with the REAL (unpadded-output) byte traffic.
    param_bytes = sum(
        int(a.size) * a.dtype.itemsize for a in (w0, b0, w1, b1, w2, b2)
    )
    cost = pl.CostEstimate(
        flops=2 * B * (n_in * w0.shape[1]
                       + w1.shape[0] * w1.shape[1]
                       + w2.shape[0] * n_out),
        transcendentals=B * (w0.shape[1] + w1.shape[1]),
        bytes_accessed=int(x.size) * x.dtype.itemsize
        + B * n_out * 4
        + param_bytes,
    )

    out = pl.pallas_call(
        bnn_kernel,
        out_shape=jax.ShapeDtypeStruct((B, n_out), jnp.float32),
        grid=grid,
        in_specs=[
            x_spec,
            const_spec(w0), const_spec(b0),
            const_spec(w1), const_spec(b1),
            const_spec(w2), const_spec(b2),
        ],
        out_specs=out_spec,
        compiler_params=pltpu.CompilerParams(
            dimension_semantics=("parallel",),  # shard batch tiles across TCs (v7x)
            vmem_limit_bytes=48 * 1024 * 1024,  # fits max_tb tile; < 64 MiB v7x VMEM
        ),
        cost_estimate=cost,
    )(x, w0, b0, w1, b1, w2, b2)
    return out


# ---------------------------------------------------------------------------
# Deterministic parameter construction mirroring BNN.__init__ /
# reset_parameters / sample_weights (xavier-uniform mus, uniform biases,
# logsig ~ U(logsig0-1, logsig0+1), weights = mu + N(0,1)*exp(logsig)).
# ---------------------------------------------------------------------------
def make_bnn_params(key, n_in, n_out, n_hid_layers=2, n_hidden=32, logsig0=-4.0):
    layers_dim = [n_in] + n_hid_layers * [n_hidden] + [n_out]

    key, k_logsig = jax.random.split(key)
    logsig = jax.random.uniform(
        k_logsig, (1,), minval=logsig0 - 1.0, maxval=logsig0 + 1.0
    )
    sig = jnp.exp(logsig)[0]

    weights, biases = [], []
    for fan_in, fan_out in zip(layers_dim[:-1], layers_dim[1:]):
        key, kw, kb, knw, knb = jax.random.split(key, 5)
        bound_w = math.sqrt(6.0 / (fan_in + fan_out))  # xavier_uniform_, gain=1
        w_mu = jax.random.uniform(
            kw, (fan_out, fan_in), minval=-bound_w, maxval=bound_w
        )
        bound_b = 1.0 / math.sqrt(fan_in)
        b_mu = jax.random.uniform(kb, (fan_out,), minval=-bound_b, maxval=bound_b)
        w = w_mu + jax.random.normal(knw, w_mu.shape) * sig
        b = b_mu + jax.random.normal(knb, b_mu.shape) * sig
        weights.append(w.astype(jnp.float32))
        biases.append(b.astype(jnp.float32))
    return weights, biases


def bnn_reference(x, weights, biases):
    """Plain-JAX reference matching the PyTorch forward exactly."""
    h = x
    n_layers = len(weights)
    for i, (w, b) in enumerate(zip(weights, biases)):
        h = h @ w.T + b
        if i < n_layers - 1:
            h = jnp.tanh(h)
    return h


if __name__ == "__main__":
    key = jax.random.PRNGKey(0)
    n_in, n_hidden, n_out = 16, 32, 8
    batch = 64

    key, k_params, k_x = jax.random.split(key, 3)
    weights, biases = make_bnn_params(
        k_params, n_in=n_in, n_out=n_out, n_hid_layers=2, n_hidden=n_hidden
    )
    x = jax.random.normal(k_x, (batch, n_in), dtype=jnp.float32)

    ref = bnn_reference(x, weights, biases)

    # f32 path (exact forward semantics); default tiling -> 2-step batch grid.
    prepped_f32 = prepare_bnn_params(weights, biases, param_dtype=jnp.float32)
    out = jax.block_until_ready(bnn_forward(x, prepped_f32))
    assert out.shape == (batch, n_out)
    assert jnp.allclose(out, ref, atol=1e-5, rtol=1e-5), "mismatch vs reference"

    # Force a longer grid to exercise the software-pipelined path too.
    out_tiled = jax.block_until_ready(bnn_forward(x, prepped_f32, max_tb=16))
    assert jnp.allclose(out_tiled, ref, atol=1e-5, rtol=1e-5), "mismatch (tiled)"

    # bf16 matmul-operand path (halved x/weight HBM streams, MXU-native on
    # v6e/v7x); accumulation/tanh/output stay f32, tolerance loosened for the
    # bf16 operand rounding.
    prepped_bf16 = prepare_bnn_params(weights, biases, param_dtype=jnp.bfloat16)
    out_bf16 = jax.block_until_ready(bnn_forward(x, prepped_bf16))
    assert out_bf16.shape == (batch, n_out)
    assert jnp.allclose(out_bf16, ref, atol=5e-2, rtol=5e-2), "mismatch (bf16)"

    print("KERNEL_OK")
</pallas_src>

<mosaic_0001>
module attributes {stable_mosaic.version = 11 : i64} {
  func.func @bnn_kernel(%arg0: i32, %arg1: memref<32x16xf32, #tpu.memory_space<vmem>>, %arg2: memref<16x128xf32, #tpu.memory_space<vmem>>, %arg3: memref<1x128xf32, #tpu.memory_space<vmem>>, %arg4: memref<128x128xf32, #tpu.memory_space<vmem>>, %arg5: memref<1x128xf32, #tpu.memory_space<vmem>>, %arg6: memref<128x8xf32, #tpu.memory_space<vmem>>, %arg7: memref<1x8xf32, #tpu.memory_space<vmem>>, %arg8: memref<32x8xf32, #tpu.memory_space<vmem>>) attributes {dimension_semantics = [#tpu.dimension_semantics<parallel>], iteration_bounds = array<i64: 2>, scalar_prefetch = 0 : i64, scratch_operands = 0 : i64, tpu.core_type = #tpu.core_type<tc>, window_params = [{transform_indices = @transform_0, window_bounds = array<i64: 32, 16>}, {pipeline_mode = #tpu.pipeline_mode<synchronous>, transform_indices = @transform_1, window_bounds = array<i64: 16, 128>}, {pipeline_mode = #tpu.pipeline_mode<synchronous>, transform_indices = @transform_2, window_bounds = array<i64: 1, 128>}, {pipeline_mode = #tpu.pipeline_mode<synchronous>, transform_indices = @transform_3, window_bounds = array<i64: 128, 128>}, {pipeline_mode = #tpu.pipeline_mode<synchronous>, transform_indices = @transform_4, window_bounds = array<i64: 1, 128>}, {pipeline_mode = #tpu.pipeline_mode<synchronous>, transform_indices = @transform_5, window_bounds = array<i64: 128, 8>}, {pipeline_mode = #tpu.pipeline_mode<synchronous>, transform_indices = @transform_6, window_bounds = array<i64: 1, 8>}, {transform_indices = @transform_7, window_bounds = array<i64: 32, 8>}]} {
    %c0 = arith.constant 0 : index
    %c0_0 = arith.constant 0 : index
    %0 = vector.load %arg1[%c0, %c0_0] : memref<32x16xf32, #tpu.memory_space<vmem>>, vector<32x16xf32>
    %c0_1 = arith.constant 0 : index
    %c0_2 = arith.constant 0 : index
    %1 = vector.load %arg2[%c0_1, %c0_2] : memref<16x128xf32, #tpu.memory_space<vmem>>, vector<16x128xf32>
    %cst = arith.constant dense<0.000000e+00> : vector<32x128xf32>
    %2 = tpu.matmul %0, %1, %cst {dimension_numbers = #tpu.dot_dimension_numbers<[1], [0], [0], [1], [0, 0, 1, 1], [], []>} : vector<32x16xf32>, vector<16x128xf32>, vector<32x128xf32> -> vector<32x128xf32>
    %c0_3 = arith.constant 0 : index
    %c0_4 = arith.constant 0 : index
    %3 = vector.load %arg3[%c0_3, %c0_4] : memref<1x128xf32, #tpu.memory_space<vmem>>, vector<1x128xf32>
    %4 = vector.broadcast %3 : vector<1x128xf32> to vector<32x128xf32>
    %5 = arith.addf %2, %4 : vector<32x128xf32>
    %6 = math.tanh %5 : vector<32x128xf32>
    %c0_5 = arith.constant 0 : index
    %c0_6 = arith.constant 0 : index
    %7 = vector.load %arg4[%c0_5, %c0_6] : memref<128x128xf32, #tpu.memory_space<vmem>>, vector<128x128xf32>
    %cst_7 = arith.constant dense<0.000000e+00> : vector<32x128xf32>
    %8 = tpu.matmul %6, %7, %cst_7 {dimension_numbers = #tpu.dot_dimension_numbers<[1], [0], [0], [1], [0, 0, 1, 1], [], []>} : vector<32x128xf32>, vector<128x128xf32>, vector<32x128xf32> -> vector<32x128xf32>
    %c0_8 = arith.constant 0 : index
    %c0_9 = arith.constant 0 : index
    %9 = vector.load %arg5[%c0_8, %c0_9] : memref<1x128xf32, #tpu.memory_space<vmem>>, vector<1x128xf32>
    %10 = vector.broadcast %9 : vector<1x128xf32> to vector<32x128xf32>
    %11 = arith.addf %8, %10 : vector<32x128xf32>
    %12 = math.tanh %11 : vector<32x128xf32>
    %c0_10 = arith.constant 0 : index
    %c0_11 = arith.constant 0 : index
    %13 = vector.load %arg6[%c0_10, %c0_11] : memref<128x8xf32, #tpu.memory_space<vmem>>, vector<128x8xf32>
    %cst_12 = arith.constant dense<0.000000e+00> : vector<32x8xf32>
    %14 = tpu.matmul %12, %13, %cst_12 {dimension_numbers = #tpu.dot_dimension_numbers<[1], [0], [0], [1], [0, 0, 1, 1], [], []>} : vector<32x128xf32>, vector<128x8xf32>, vector<32x8xf32> -> vector<32x8xf32>
    %c0_13 = arith.constant 0 : index
    %c0_14 = arith.constant 0 : index
    %15 = vector.load %arg7[%c0_13, %c0_14] : memref<1x8xf32, #tpu.memory_space<vmem>>, vector<1x8xf32>
    %16 = vector.broadcast %15 : vector<1x8xf32> to vector<32x8xf32>
    %17 = arith.addf %14, %16 : vector<32x8xf32>
    %c0_15 = arith.constant 0 : index
    %c0_16 = arith.constant 0 : index
    %18 = vector.load %arg8[%c0_15, %c0_16] : memref<32x8xf32, #tpu.memory_space<vmem>>, vector<32x8xf32>
    tpu.vector_store %arg8[%c0_15, %c0_16], %17 {strides = array<i32>} : memref<32x8xf32, #tpu.memory_space<vmem>>, vector<32x8xf32>,
    return
  }
  func.func @transform_0(%arg0: i32) -> (i32, i32) {
    %c0_i32 = arith.constant 0 : i32
    %c0_i32_0 = arith.constant 0 : i32
    return %arg0, %c0_i32 : i32, i32
  }
  func.func @transform_1(%arg0: i32) -> (i32, i32) {
    %c0_i32 = arith.constant 0 : i32
    %c0_i32_0 = arith.constant 0 : i32
    %c0_i32_1 = arith.constant 0 : i32
    return %c0_i32, %c0_i32_0 : i32, i32
  }
  func.func @transform_2(%arg0: i32) -> (i32, i32) {
    %c0_i32 = arith.constant 0 : i32
    %c0_i32_0 = arith.constant 0 : i32
    %c0_i32_1 = arith.constant 0 : i32
    return %c0_i32, %c0_i32_0 : i32, i32
  }
  func.func @transform_3(%arg0: i32) -> (i32, i32) {
    %c0_i32 = arith.constant 0 : i32
    %c0_i32_0 = arith.constant 0 : i32
    %c0_i32_1 = arith.constant 0 : i32
    return %c0_i32, %c0_i32_0 : i32, i32
  }
  func.func @transform_4(%arg0: i32) -> (i32, i32) {
    %c0_i32 = arith.constant 0 : i32
    %c0_i32_0 = arith.constant 0 : i32
    %c0_i32_1 = arith.constant 0 : i32
    return %c0_i32, %c0_i32_0 : i32, i32
  }
  func.func @transform_5(%arg0: i32) -> (i32, i32) {
    %c0_i32 = arith.constant 0 : i32
    %c0_i32_0 = arith.constant 0 : i32
    %c0_i32_1 = arith.constant 0 : i32
    return %c0_i32, %c0_i32_0 : i32, i32
  }
  func.func @transform_6(%arg0: i32) -> (i32, i32) {
    %c0_i32 = arith.constant 0 : i32
    %c0_i32_0 = arith.constant 0 : i32
    %c0_i32_1 = arith.constant 0 : i32
    return %c0_i32, %c0_i32_0 : i32, i32
  }
  func.func @transform_7(%arg0: i32) -> (i32, i32) {
    %c0_i32 = arith.constant 0 : i32
    %c0_i32_0 = arith.constant 0 : i32
    return %arg0, %c0_i32 : i32, i32
  }
}

</mosaic_0001>

<llo_original>
// kernel: tpu_custom_call.1
$region0: #{tpu_custom_call.1}
  #allocation0 [shape = 'u32[]', space=smem, size = 0x4, offset = 0x4, fixed_abs, tag = 'smem constant byte address 0x4 - core index']
  #allocation1 [shape = 'u32[144,128]{1,0:T(1,128)}', space=vmem, size = 0x12000, scoped, tag = 'internal scratch']
  %s0 = inlined_call_operand.vmem [shape: f32[64,16], index: 0, kind: input, shape index: {}]
  %s1 = inlined_call_operand.vmem [shape: f32[16,128], index: 1, kind: input, shape index: {}]
  %s2 = inlined_call_operand.vmem [shape: f32[1,128], index: 2, kind: input, shape index: {}]
  %s3 = inlined_call_operand.vmem [shape: f32[128,128], index: 3, kind: input, shape index: {}]
  %s4 = inlined_call_operand.vmem [shape: f32[1,128], index: 4, kind: input, shape index: {}]
  %s5 = inlined_call_operand.vmem [shape: f32[128,8], index: 5, kind: input, shape index: {}]
  %s6 = inlined_call_operand.vmem [shape: f32[1,8], index: 6, kind: input, shape index: {}]
  %s7 = inlined_call_operand.vmem [shape: f32[64,8], index: 7, kind: output, shape index: {}]
  %s8 = sld [smem:[#allocation0]]
  $region61: #{tpu_custom_call.1} parent=0
    _
  %s10 = ssub.s32 1, %s8
  %s11 = scalar_select 0, %s10, %s8
  loop: start=0, step=1, limit=4
  $region2: #{tpu_custom_call.1} parent=0 // loop_pre_header
    _
  $region3: #{tpu_custom_call.1} parent=0 // loop_header
    %s13 = sphi 0, %s17
    %p14 = scmp.ge.s32.totalorder %s13, 4
    %s23 = sphi 0, %s25
    %s26 = sphi 0, %s23
    %s27 = sphi 0, %s26
    %s43 = sphi 0, %s27
    %s47 = sphi 0, %s47
    %s49 = sphi 0, %s47
    %s50 = sphi 0, %s49
    %s64 = sphi 0, %s50
    %s68 = sphi 0, %s68
    %s70 = sphi 0, %s68
    %s71 = sphi 0, %s70
    %s85 = sphi 0, %s71
    %s89 = sphi 0, %s89
    %s91 = sphi 0, %s89
    %s92 = sphi 0, %s91
    %s106 = sphi 0, %s92
    %s110 = sphi 0, %s110
    %s112 = sphi 0, %s110
    %s113 = sphi 0, %s112
    %s127 = sphi 0, %s113
    %s131 = sphi 0, %s131
    %s133 = sphi 0, %s131
    %s134 = sphi 0, %s133
    %s148 = sphi 0, %s134
    %s152 = sphi 0, %s152
    %s154 = sphi 0, %s152
    %s155 = sphi 0, %s154
    %s169 = sphi 0, %s155
    %s175 = sphi 0, %s177
    %s178 = sphi 0, %s175
    %s179 = sphi 0, %s178
    %s195 = sphi 0, %s179
  $region4: #{tpu_custom_call.1} parent=0 // loop_header_branch
    %16 = sbr.rel (%p14) target = $region8
  $region5: #{tpu_custom_call.1} parent=0 // loop_body
    %s18 = ssub.s32 %s13, 1
    %s19 = ssub.s32 %s13, 2
    %s20 = sadd.s32 %s13, 1
    %s21 = ssub.s32 %s13, %s20
    %p22 = scmp.eq.s32.totalorder %s21, 0
    %s24 = sadd.s32 %s23, 1
    %s25 = scalar_select %p22, %s23, %s24
    %p28 = pneg %p22
    %p29 = scmp.eq.s32.totalorder %s13, 1
    %p30 = por %p28, %p29
    %p31 = scmp.ne.s32.totalorder %s23, %s26
    %p32 = scmp.eq.s32.totalorder %s13, 0
    %p33 = por %p31, %p32
    %p34 = scmp.ne.s32.totalorder %s23, %s26
    %p35 = scmp.eq.s32.totalorder %s18, 1
    %p36 = por %p34, %p35
    %p37 = scmp.ne.s32.totalorder %s26, %s27
    %p38 = scmp.eq.s32.totalorder %s18, 0
    %p39 = por %p37, %p38
    %p40 = scmp.ne.s32.totalorder %s26, %s27
    %p41 = scmp.eq.s32.totalorder %s19, 1
    %p42 = por %p40, %p41
    %p44 = scmp.ne.s32.totalorder %s27, %s43
    %p45 = scmp.eq.s32.totalorder %s19, 0
    %p46 = por %p44, %p45
    %s48 = sadd.s32 %s47, 1
    %p51 = scmp.eq.s32.totalorder %s13, 1
    %p52 = scmp.ne.s32.totalorder %s47, %s49
    %p53 = scmp.eq.s32.totalorder %s13, 0
    %p54 = por %p52, %p53
    %p55 = scmp.ne.s32.totalorder %s47, %s49
    %p56 = scmp.eq.s32.totalorder %s18, 1
    %p57 = por %p55, %p56
    %p58 = scmp.ne.s32.totalorder %s49, %s50
    %p59 = scmp.eq.s32.totalorder %s18, 0
    %p60 = por %p58, %p59
    %p61 = scmp.ne.s32.totalorder %s49, %s50
    %p62 = scmp.eq.s32.totalorder %s19, 1
    %p63 = por %p61, %p62
    %p65 = scmp.ne.s32.totalorder %s50, %s64
    %p66 = scmp.eq.s32.totalorder %s19, 0
    %p67 = por %p65, %p66
    %s69 = sadd.s32 %s68, 1
    %p72 = scmp.eq.s32.totalorder %s13, 1
    %p73 = scmp.ne.s32.totalorder %s68, %s70
    %p74 = scmp.eq.s32.totalorder %s13, 0
    %p75 = por %p73, %p74
    %p76 = scmp.ne.s32.totalorder %s68, %s70
    %p77 = scmp.eq.s32.totalorder %s18, 1
    %p78 = por %p76, %p77
    %p79 = scmp.ne.s32.totalorder %s70, %s71
    %p80 = scmp.eq.s32.totalorder %s18, 0
    %p81 = por %p79, %p80
    %p82 = scmp.ne.s32.totalorder %s70, %s71
    %p83 = scmp.eq.s32.totalorder %s19, 1
    %p84 = por %p82, %p83
    %p86 = scmp.ne.s32.totalorder %s71, %s85
    %p87 = scmp.eq.s32.totalorder %s19, 0
    %p88 = por %p86, %p87
    %s90 = sadd.s32 %s89, 1
    %p93 = scmp.eq.s32.totalorder %s13, 1
    %p94 = scmp.ne.s32.totalorder %s89, %s91
    %p95 = scmp.eq.s32.totalorder %s13, 0
    %p96 = por %p94, %p95
    %p97 = scmp.ne.s32.totalorder %s89, %s91
    %p98 = scmp.eq.s32.totalorder %s18, 1
    %p99 = por %p97, %p98
    %p100 = scmp.ne.s32.totalorder %s91, %s92
    %p101 = scmp.eq.s32.totalorder %s18, 0
    %p102 = por %p100, %p101
    %p103 = scmp.ne.s32.totalorder %s91, %s92
    %p104 = scmp.eq.s32.totalorder %s19, 1
    %p105 = por %p103, %p104
    %p107 = scmp.ne.s32.totalorder %s92, %s106
    %p108 = scmp.eq.s32.totalorder %s19, 0
    %p109 = por %p107, %p108
    %s111 = sadd.s32 %s110, 1
    %p114 = scmp.eq.s32.totalorder %s13, 1
    %p115 = scmp.ne.s32.totalorder %s110, %s112
    %p116 = scmp.eq.s32.totalorder %s13, 0
    %p117 = por %p115, %p116
    %p118 = scmp.ne.s32.totalorder %s110, %s112
    %p119 = scmp.eq.s32.totalorder %s18, 1
    %p120 = por %p118, %p119
    %p121 = scmp.ne.s32.totalorder %s112, %s113
    %p122 = scmp.eq.s32.totalorder %s18, 0
    %p123 = por %p121, %p122
    %p124 = scmp.ne.s32.totalorder %s112, %s113
    %p125 = scmp.eq.s32.totalorder %s19, 1
    %p126 = por %p124, %p125
    %p128 = scmp.ne.s32.totalorder %s113, %s127
    %p129 = scmp.eq.s32.totalorder %s19, 0
    %p130 = por %p128, %p129
    %s132 = sadd.s32 %s131, 1
    %p135 = scmp.eq.s32.totalorder %s13, 1
    %p136 = scmp.ne.s32.totalorder %s131, %s133
    %p137 = scmp.eq.s32.totalorder %s13, 0
    %p138 = por %p136, %p137
    %p139 = scmp.ne.s32.totalorder %s131, %s133
    %p140 = scmp.eq.s32.totalorder %s18, 1
    %p141 = por %p139, %p140
    %p142 = scmp.ne.s32.totalorder %s133, %s134
    %p143 = scmp.eq.s32.totalorder %s18, 0
    %p144 = por %p142, %p143
    %p145 = scmp.ne.s32.totalorder %s133, %s134
    %p146 = scmp.eq.s32.totalorder %s19, 1
    %p147 = por %p145, %p146
    %p149 = scmp.ne.s32.totalorder %s134, %s148
    %p150 = scmp.eq.s32.totalorder %s19, 0
    %p151 = por %p149, %p150
    %s153 = sadd.s32 %s152, 1
    %p156 = scmp.eq.s32.totalorder %s13, 1
    %p157 = scmp.ne.s32.totalorder %s152, %s154
    %p158 = scmp.eq.s32.totalorder %s13, 0
    %p159 = por %p157, %p158
    %p160 = scmp.ne.s32.totalorder %s152, %s154
    %p161 = scmp.eq.s32.totalorder %s18, 1
    %p162 = por %p160, %p161
    %p163 = scmp.ne.s32.totalorder %s154, %s155
    %p164 = scmp.eq.s32.totalorder %s18, 0
    %p165 = por %p163, %p164
    %p166 = scmp.ne.s32.totalorder %s154, %s155
    %p167 = scmp.eq.s32.totalorder %s19, 1
    %p168 = por %p166, %p167
    %p170 = scmp.ne.s32.totalorder %s155, %s169
    %p171 = scmp.eq.s32.totalorder %s19, 0
    %p172 = por %p170, %p171
    %s173 = ssub.s32 %s13, %s20
    %p174 = scmp.eq.s32.totalorder %s173, 0
    %s176 = sadd.s32 %s175, 1
    %s177 = scalar_select %p174, %s175, %s176
    %p180 = pneg %p174
    %p181 = scmp.eq.s32.totalorder %s13, 1
    %p182 = por %p180, %p181
    %p183 = scmp.ne.s32.totalorder %s175, %s178
    %p184 = scmp.eq.s32.totalorder %s13, 0
    %p185 = por %p183, %p184
    %p186 = scmp.ne.s32.totalorder %s175, %s178
    %p187 = scmp.eq.s32.totalorder %s18, 1
    %p188 = por %p186, %p187
    %p189 = scmp.ne.s32.totalorder %s178, %s179
    %p190 = scmp.eq.s32.totalorder %s18, 0
    %p191 = por %p189, %p190
    %p192 = scmp.ne.s32.totalorder %s178, %s179
    %p193 = scmp.eq.s32.totalorder %s19, 1
    %p194 = por %p192, %p193
    %p196 = scmp.ne.s32.totalorder %s179, %s195
    %p197 = scmp.eq.s32.totalorder %s19, 0
    %p198 = por %p196, %p197
    %p199 = scmp.le.s32.totalorder 1, %s13
    %p200 = scmp.lt.s32.totalorder %s13, 3
    %p201 = pnand %p199, %p200
    %p202 = pneg %p201
    // Predicated region
    $region9: #{tpu_custom_call.1} parent=5 // pred_check
      _
    $region10: #{tpu_custom_call.1} parent=5 // pred_check_branch
      %204 = sbr.rel (%p201) target = $region12
    $region11: #{tpu_custom_call.1} parent=5 // pred_region
      %s205 = ssub.s32 %s13, 1
      // Predicated region
      $region13: #{tpu_custom_call.1} parent=11 // pred_check
        %p206 = pneg %p60
      $region14: #{tpu_custom_call.1} parent=11 // pred_check_branch
        %208 = sbr.rel (%p206) target = $region16
      $region15: #{tpu_custom_call.1} parent=11 // pred_region
        _
      $region16: #{tpu_custom_call.1} parent=11 // pred_fallthru
        _
      // Predicated region
      $region17: #{tpu_custom_call.1} parent=11 // pred_check
        %p209 = pneg %p81
      $region18: #{tpu_custom_call.1} parent=11 // pred_check_branch
        %211 = sbr.rel (%p209) target = $region20
      $region19: #{tpu_custom_call.1} parent=11 // pred_region
        _
      $region20: #{tpu_custom_call.1} parent=11 // pred_fallthru
        _
      // Predicated region
      $region21: #{tpu_custom_call.1} parent=11 // pred_check
        %p212 = pneg %p102
      $region22: #{tpu_custom_call.1} parent=11 // pred_check_branch
        %214 = sbr.rel (%p212) target = $region24
      $region23: #{tpu_custom_call.1} parent=11 // pred_region
        _
      $region24: #{tpu_custom_call.1} parent=11 // pred_fallthru
        _
      // Predicated region
      $region25: #{tpu_custom_call.1} parent=11 // pred_check
        %p215 = pneg %p123
      $region26: #{tpu_custom_call.1} parent=11 // pred_check_branch
        %217 = sbr.rel (%p215) target = $region28
      $region27: #{tpu_custom_call.1} parent=11 // pred_region
        _
      $region28: #{tpu_custom_call.1} parent=11 // pred_fallthru
        _
      // Predicated region
      $region29: #{tpu_custom_call.1} parent=11 // pred_check
        %p218 = pneg %p144
      $region30: #{tpu_custom_call.1} parent=11 // pred_check_branch
        %220 = sbr.rel (%p218) target = $region32
      $region31: #{tpu_custom_call.1} parent=11 // pred_region
        _
      $region32: #{tpu_custom_call.1} parent=11 // pred_fallthru
        _
      // Predicated region
      $region33: #{tpu_custom_call.1} parent=11 // pred_check
        %p221 = pneg %p165
      $region34: #{tpu_custom_call.1} parent=11 // pred_check_branch
        %223 = sbr.rel (%p221) target = $region36
      $region35: #{tpu_custom_call.1} parent=11 // pred_region
        _
      $region36: #{tpu_custom_call.1} parent=11 // pred_fallthru
        _
    $region12: #{tpu_custom_call.1} parent=5 // pred_fallthru
      _
    %p224 = scmp.lt.s32.totalorder %s13, 2
    // Predicated region
    $region37: #{tpu_custom_call.1} parent=5 // pred_check
      %p225 = pneg %p224
    $region38: #{tpu_custom_call.1} parent=5 // pred_check_branch
      %227 = sbr.rel (%p225) target = $region40
    $region39: #{tpu_custom_call.1} parent=5 // pred_region
      // Predicated region
      $region41: #{tpu_custom_call.1} parent=39 // pred_check
        %p228 = pneg %p33
      $region42: #{tpu_custom_call.1} parent=39 // pred_check_branch
        %230 = sbr.rel (%p228) target = $region44
      $region43: #{tpu_custom_call.1} parent=39 // pred_region
        %s231 = smul.u32 4, %s13
        %p232 = scmp.lt.s32.totalorder %s231, 7
        %s233 = scalar_select %p232, %s231, 7
        %s234 = smul.addr %s233, 8
        %s235 = scalar_lea.vmem %s0, %s234
        %s236 = smul.u32 4, %s13
      $region44: #{tpu_custom_call.1} parent=39 // pred_fallthru
        _
    $region40: #{tpu_custom_call.1} parent=5 // pred_fallthru
      _
    %p237 = scmp.le.s32.totalorder 1, %s13
    %p238 = scmp.lt.s32.totalorder %s13, 3
    %p239 = pnand %p237, %p238
    %p240 = pneg %p239
    // Predicated region
    $region45: #{tpu_custom_call.1} parent=5 // pred_check
      _
    $region46: #{tpu_custom_call.1} parent=5 // pred_check_branch
      %242 = sbr.rel (%p239) target = $region48
    $region47: #{tpu_custom_call.1} parent=5 // pred_region
      %s243 = ssub.s32 %s13, 1
      %s244 = smul.u32 4, %s18
      %p245 = scmp.lt.s32.totalorder %s244, 7
      %s246 = scalar_select %p245, %s244, 7
      %s247 = smul.addr %s246, 8
      %s248 = scalar_lea.vmem %s0, %s247
      %p249 = pneg %p39
      %p250 = pneg %p36
      %p251 = pneg %p60
      %p252 = pneg %p57
      %p253 = pneg %p81
      %p254 = pneg %p78
      %p255 = pneg %p102
      %p256 = pneg %p99
      %p257 = pneg %p123
      %p258 = pneg %p120
      %p259 = pneg %p144
      %p260 = pneg %p141
      %p261 = pneg %p165
      %p262 = pneg %p162
      %p263 = pneg %p191
      %p264 = pneg %p188
      %s265 = smul.u32 4, %s18
      %p266 = scmp.lt.s32.totalorder %s265, 7
      %s267 = scalar_select %p266, %s265, 7
      %s268 = smul.addr %s267, 8
      %s269 = scalar_lea.vmem %s7, %s268
      %s270 = smul.u32 4, %s18
      %p271 = scmp.lt.s32.totalorder %s270, 7
      %s272 = scalar_select %p271, %s270, 7
      %s273 = smul.addr %s272, 8
      %s274 = scalar_lea.vmem %s0, %s273
      %s275 = smul.u32 4, %s18
      %s276 = smul.u32 4, %s18
      %p277 = scmp.lt.s32.totalorder %s276, 7
      %s278 = scalar_select %p277, %s276, 7
      %s279 = smul.addr %s278, 8
      %s280 = scalar_lea.vmem %s7, %s279
      %s281 = smul.u32 4, %s18
      %v282 = vld [vmem:[%s274] sm:$0xff]
      %v283 = vld [vmem:[%s274 + $0x8] sm:$0xff]
      %v284 = vld [vmem:[%s274 + $0x10] sm:$0xff]
      %v285 = vld [vmem:[%s274 + $0x18] sm:$0xff]
      %v286 = vld [vmem:[%s1] sm:$0xff]
      %v287 = vld [vmem:[%s1 + $0x8] sm:$0xff]
      %v288 = vld [vmem:[%s2] sm:$0x1]
      %v290 = vlaneseq
      %v291 = vshrl.u32 %v290, 7
      %v292 = vsub.s32 0, %v291
      %v293 = vrot.slane %v288, %v292
      %vm295 = vcmask 130048
      %v297 = vsel %vm295, %v282, 0
      %v300 = vsel %vm295, %v283, 0
      %v303 = vsel %vm295, %v284, 0
      %v306 = vsel %vm295, %v285, 0
      %308 = vmatprep.subr.mxu0 0.0
      %309 = vmatpush1.msra.mxu0 0.0
      %310 = vmatprep.subr.mxu0 0.0
      %311 = vmatpush1.msra.mxu0 0.0
      %312 = vmatprep.subr.mxu0 0.0
      %313 = vmatpush1.msra.mxu0 0.0
      %314 = vmatprep.subr.mxu0 0.0
      %315 = vmatpush1.msra.mxu0 0.0
      %316 = vmatprep.subr.mxu0 0.0
      %317 = vmatpush1.msra.mxu0 0.0
      %318 = vmatprep.subr.mxu0 0.0
      %319 = vmatpush1.msra.mxu0 0.0
      %320 = vmatprep.subr.mxu0 0.0
      %321 = vmatpush1.msra.mxu0 0.0
      %322 = vmatprep.subr.mxu0 0.0
      %323 = vmatpush1.msra.mxu0 0.0
      %324 = vmatprep.subr.mxu0 0.0
      %325 = vmatpush1.msra.mxu0 0.0
      %326 = vmatprep.subr.mxu0 0.0
      %327 = vmatpush1.msra.mxu0 0.0
      %328 = vmatprep.subr.mxu0 0.0
      %329 = vmatpush1.msra.mxu0 0.0
      %330 = vmatprep.subr.mxu0 0.0
      %331 = vmatpush1.msra.mxu0 0.0
      %332 = vmatprep.subr.mxu0 0.0
      %333 = vmatpush1.msra.mxu0 0.0
      %334 = vmatprep.subr.mxu0 0.0
      %335 = vmatpush1.msra.mxu0 0.0
      %336 = vmatprep.subr.mxu0 0.0
      %337 = vmatpush1.msra.mxu0 %v287
      %338 = vmatprep.subr.mxu0 0.0
      %339 = vmatpush1.msra.mxu0 %v286
      %340 = vmatprep.subr.mxu0 0.0
      %341 = vmatpush2.msra.mxu0 0.0
      %342 = vmatprep.subr.mxu0 0.0
      %343 = vmatpush2.msra.mxu0 0.0
      %344 = vmatprep.subr.mxu0 0.0
      %345 = vmatpush2.msra.mxu0 0.0
      %346 = vmatprep.subr.mxu0 0.0
      %347 = vmatpush2.msra.mxu0 0.0
      %348 = vmatprep.subr.mxu0 0.0
      %349 = vmatpush2.msra.mxu0 0.0
      %350 = vmatprep.subr.mxu0 0.0
      %351 = vmatpush2.msra.mxu0 0.0
      %352 = vmatprep.subr.mxu0 0.0
      %353 = vmatpush2.msra.mxu0 0.0
      %354 = vmatprep.subr.mxu0 0.0
      %355 = vmatpush2.msra.mxu0 0.0
      %356 = vmatprep.subr.mxu0 0.0
      %357 = vmatpush2.msra.mxu0 0.0
      %358 = vmatprep.subr.mxu0 0.0
      %359 = vmatpush2.msra.mxu0 0.0
      %360 = vmatprep.subr.mxu0 0.0
      %361 = vmatpush2.msra.mxu0 0.0
      %362 = vmatprep.subr.mxu0 0.0
      %363 = vmatpush2.msra.mxu0 0.0
      %364 = vmatprep.subr.mxu0 0.0
      %365 = vmatpush2.msra.mxu0 0.0
      %366 = vmatprep.subr.mxu0 0.0
      %367 = vmatpush2.msra.mxu0 0.0
      %368 = vmatprep.subr.mxu0 0.0
      %369 = vmatpush2.msra.mxu0 0.0
      %370 = vmatprep.subr.mxu0 0.0
      %371 = vmatpush2.msra.mxu0 0.0
      %372 = vmatprep.mubr.f32.mxu0 0.0
      %373 = vmatmul.mubr.f32.gmra.mxu0 %v297
      %v374 = vpop.f32.mrf.mxu0
      %v375 = vadd.f32 %v293, %v374
      %v376 = vpop.f32.mrf.mxu0
      %377 = vmatprep.mubr.f32.mxu0 0.0
      %378 = vmatmul.mubr.f32.gmra.mxu0 %v300
      %v379 = vpop.f32.mrf.mxu0
      %v380 = vadd.f32 %v293, %v379
      %v381 = vpop.f32.mrf.mxu0
      %382 = vmatprep.mubr.f32.mxu0 0.0
      %383 = vmatmul.mubr.f32.gmra.mxu0 %v303
      %v384 = vpop.f32.mrf.mxu0
      %v385 = vadd.f32 %v293, %v384
      %v386 = vpop.f32.mrf.mxu0
      %387 = vmatprep.mubr.f32.mxu0 0.0
      %388 = vmatmul.mubr.f32.gmra.mxu0 %v306
      %v389 = vpop.f32.mrf.mxu0
      %v390 = vadd.f32 %v293, %v389
      %v391 = vpop.f32.mrf.mxu0
      %392 = vdwg.mxu0
      %v393 = vtanh.pop %v375
      %v394 = vtanh.pop %v380
      %v395 = vtanh.pop %v385
      %v396 = vtanh.pop %v390
      %v397 = vld [vmem:[%s3] sm:$0xff]
      %v398 = vld [vmem:[%s3 + $0x8] sm:$0xff]
      %v399 = vld [vmem:[%s3 + $0x10] sm:$0xff]
      %v400 = vld [vmem:[%s3 + $0x18] sm:$0xff]
      %v401 = vld [vmem:[%s3 + $0x20] sm:$0xff]
      %v402 = vld [vmem:[%s3 + $0x28] sm:$0xff]
      %v403 = vld [vmem:[%s3 + $0x30] sm:$0xff]
      %v404 = vld [vmem:[%s3 + $0x38] sm:$0xff]
      %v405 = vld [vmem:[%s3 + $0x40] sm:$0xff]
      %v406 = vld [vmem:[%s3 + $0x48] sm:$0xff]
      %v407 = vld [vmem:[%s3 + $0x50] sm:$0xff]
      %v408 = vld [vmem:[%s3 + $0x58] sm:$0xff]
      %v409 = vld [vmem:[%s3 + $0x60] sm:$0xff]
      %v410 = vld [vmem:[%s3 + $0x68] sm:$0xff]
      %v411 = vld [vmem:[%s3 + $0x70] sm:$0xff]
      %v412 = vld [vmem:[%s3 + $0x78] sm:$0xff]
      %v413 = vld [vmem:[%s4] sm:$0x1]
      %v415 = vlaneseq
      %v416 = vshrl.u32 %v415, 7
      %v417 = vsub.s32 0, %v416
      %v418 = vrot.slane %v413, %v417
      %420 = vmatprep.subr.mxu0 0.0
      %421 = vmatpush1.msra.mxu0 %v412
      %422 = vmatprep.subr.mxu0 0.0
      %423 = vmatpush1.msra.mxu0 %v411
      %424 = vmatprep.subr.mxu0 0.0
      %425 = vmatpush1.msra.mxu0 %v410
      %426 = vmatprep.subr.mxu0 0.0
      %427 = vmatpush1.msra.mxu0 %v409
      %428 = vmatprep.subr.mxu0 0.0
      %429 = vmatpush1.msra.mxu0 %v408
      %430 = vmatprep.subr.mxu0 0.0
      %431 = vmatpush1.msra.mxu0 %v407
      %432 = vmatprep.subr.mxu0 0.0
      %433 = vmatpush1.msra.mxu0 %v406
      %434 = vmatprep.subr.mxu0 0.0
      %435 = vmatpush1.msra.mxu0 %v405
      %436 = vmatprep.subr.mxu0 0.0
      %437 = vmatpush1.msra.mxu0 %v404
      %438 = vmatprep.subr.mxu0 0.0
      %439 = vmatpush1.msra.mxu0 %v403
      %440 = vmatprep.subr.mxu0 0.0
      %441 = vmatpush1.msra.mxu0 %v402
      %442 = vmatprep.subr.mxu0 0.0
      %443 = vmatpush1.msra.mxu0 %v401
      %444 = vmatprep.subr.mxu0 0.0
      %445 = vmatpush1.msra.mxu0 %v400
      %446 = vmatprep.subr.mxu0 0.0
      %447 = vmatpush1.msra.mxu0 %v399
      %448 = vmatprep.subr.mxu0 0.0
      %449 = vmatpush1.msra.mxu0 %v398
      %450 = vmatprep.subr.mxu0 0.0
      %451 = vmatpush1.msra.mxu0 %v397
      %452 = vmatprep.subr.mxu0 0.0
      %453 = vmatpush2.msra.mxu0 0.0
      %454 = vmatprep.subr.mxu0 0.0
      %455 = vmatpush2.msra.mxu0 0.0
      %456 = vmatprep.subr.mxu0 0.0
      %457 = vmatpush2.msra.mxu0 0.0
      %458 = vmatprep.subr.mxu0 0.0
      %459 = vmatpush2.msra.mxu0 0.0
      %460 = vmatprep.subr.mxu0 0.0
      %461 = vmatpush2.msra.mxu0 0.0
      %462 = vmatprep.subr.mxu0 0.0
      %463 = vmatpush2.msra.mxu0 0.0
      %464 = vmatprep.subr.mxu0 0.0
      %465 = vmatpush2.msra.mxu0 0.0
      %466 = vmatprep.subr.mxu0 0.0
      %467 = vmatpush2.msra.mxu0 0.0
      %468 = vmatprep.subr.mxu0 0.0
      %469 = vmatpush2.msra.mxu0 0.0
      %470 = vmatprep.subr.mxu0 0.0
      %471 = vmatpush2.msra.mxu0 0.0
      %472 = vmatprep.subr.mxu0 0.0
      %473 = vmatpush2.msra.mxu0 0.0
      %474 = vmatprep.subr.mxu0 0.0
      %475 = vmatpush2.msra.mxu0 0.0
      %476 = vmatprep.subr.mxu0 0.0
      %477 = vmatpush2.msra.mxu0 0.0
      %478 = vmatprep.subr.mxu0 0.0
      %479 = vmatpush2.msra.mxu0 0.0
      %480 = vmatprep.subr.mxu0 0.0
      %481 = vmatpush2.msra.mxu0 0.0
      %482 = vmatprep.subr.mxu0 0.0
      %483 = vmatpush2.msra.mxu0 0.0
      %484 = vmatprep.mubr.f32.mxu0 0.0
      %485 = vmatmul.mubr.f32.gmra.mxu0 %v393
      %v486 = vpop.f32.mrf.mxu0
      %v487 = vadd.f32 %v418, %v486
      %v488 = vpop.f32.mrf.mxu0
      %489 = vmatprep.mubr.f32.mxu0 0.0
      %490 = vmatmul.mubr.f32.gmra.mxu0 %v394
      %v491 = vpop.f32.mrf.mxu0
      %v492 = vadd.f32 %v418, %v491
      %v493 = vpop.f32.mrf.mxu0
      %494 = vmatprep.mubr.f32.mxu0 0.0
      %495 = vmatmul.mubr.f32.gmra.mxu0 %v395
      %v496 = vpop.f32.mrf.mxu0
      %v497 = vadd.f32 %v418, %v496
      %v498 = vpop.f32.mrf.mxu0
      %499 = vmatprep.mubr.f32.mxu0 0.0
      %500 = vmatmul.mubr.f32.gmra.mxu0 %v396
      %v501 = vpop.f32.mrf.mxu0
      %v502 = vadd.f32 %v418, %v501
      %v503 = vpop.f32.mrf.mxu0
      %504 = vdwg.mxu0
      %v505 = vtanh.pop %v487
      %v506 = vtanh.pop %v492
      %v507 = vtanh.pop %v497
      %v508 = vtanh.pop %v502
      %v509 = vld [vmem:[%s5] sm:$0xff]
      %v510 = vld [vmem:[%s5 + $0x8] sm:$0xff]
      %v511 = vld [vmem:[%s5 + $0x10] sm:$0xff]
      %v512 = vld [vmem:[%s5 + $0x18] sm:$0xff]
      %v513 = vld [vmem:[%s5 + $0x20] sm:$0xff]
      %v514 = vld [vmem:[%s5 + $0x28] sm:$0xff]
      %v515 = vld [vmem:[%s5 + $0x30] sm:$0xff]
      %v516 = vld [vmem:[%s5 + $0x38] sm:$0xff]
      %v517 = vld [vmem:[%s5 + $0x40] sm:$0xff]
      %v518 = vld [vmem:[%s5 + $0x48] sm:$0xff]
      %v519 = vld [vmem:[%s5 + $0x50] sm:$0xff]
      %v520 = vld [vmem:[%s5 + $0x58] sm:$0xff]
      %v521 = vld [vmem:[%s5 + $0x60] sm:$0xff]
      %v522 = vld [vmem:[%s5 + $0x68] sm:$0xff]
      %v523 = vld [vmem:[%s5 + $0x70] sm:$0xff]
      %v524 = vld [vmem:[%s5 + $0x78] sm:$0xff]
      %v525 = vld [vmem:[%s6] sm:$0x1]
      %v527 = vlaneseq
      %v528 = vshrl.u32 %v527, 7
      %v529 = vsub.s32 0, %v528
      %v530 = vrot.slane %v525, %v529
      %532 = vmatprep.subr.mxu0 0.0
      %533 = vmatpush1.msra.mxu0 %v524
      %534 = vmatprep.subr.mxu0 0.0
      %535 = vmatpush1.msra.mxu0 %v523
      %536 = vmatprep.subr.mxu0 0.0
      %537 = vmatpush1.msra.mxu0 %v522
      %538 = vmatprep.subr.mxu0 0.0
      %539 = vmatpush1.msra.mxu0 %v521
      %540 = vmatprep.subr.mxu0 0.0
      %541 = vmatpush1.msra.mxu0 %v520
      %542 = vmatprep.subr.mxu0 0.0
      %543 = vmatpush1.msra.mxu0 %v519
      %544 = vmatprep.subr.mxu0 0.0
      %545 = vmatpush1.msra.mxu0 %v518
      %546 = vmatprep.subr.mxu0 0.0
      %547 = vmatpush1.msra.mxu0 %v517
      %548 = vmatprep.subr.mxu0 0.0
      %549 = vmatpush1.msra.mxu0 %v516
      %550 = vmatprep.subr.mxu0 0.0
      %551 = vmatpush1.msra.mxu0 %v515
      %552 = vmatprep.subr.mxu0 0.0
      %553 = vmatpush1.msra.mxu0 %v514
      %554 = vmatprep.subr.mxu0 0.0
      %555 = vmatpush1.msra.mxu0 %v513
      %556 = vmatprep.subr.mxu0 0.0
      %557 = vmatpush1.msra.mxu0 %v512
      %558 = vmatprep.subr.mxu0 0.0
      %559 = vmatpush1.msra.mxu0 %v511
      %560 = vmatprep.subr.mxu0 0.0
      %561 = vmatpush1.msra.mxu0 %v510
      %562 = vmatprep.subr.mxu0 0.0
      %563 = vmatpush1.msra.mxu0 %v509
      %564 = vmatprep.subr.mxu0 0.0
      %565 = vmatpush2.msra.mxu0 0.0
      %566 = vmatprep.subr.mxu0 0.0
      %567 = vmatpush2.msra.mxu0 0.0
      %568 = vmatprep.subr.mxu0 0.0
      %569 = vmatpush2.msra.mxu0 0.0
      %570 = vmatprep.subr.mxu0 0.0
      %571 = vmatpush2.msra.mxu0 0.0
      %572 = vmatprep.subr.mxu0 0.0
      %573 = vmatpush2.msra.mxu0 0.0
      %574 = vmatprep.subr.mxu0 0.0
      %575 = vmatpush2.msra.mxu0 0.0
      %576 = vmatprep.subr.mxu0 0.0
      %577 = vmatpush2.msra.mxu0 0.0
      %578 = vmatprep.subr.mxu0 0.0
      %579 = vmatpush2.msra.mxu0 0.0
      %580 = vmatprep.subr.mxu0 0.0
      %581 = vmatpush2.msra.mxu0 0.0
      %582 = vmatprep.subr.mxu0 0.0
      %583 = vmatpush2.msra.mxu0 0.0
      %584 = vmatprep.subr.mxu0 0.0
      %585 = vmatpush2.msra.mxu0 0.0
      %586 = vmatprep.subr.mxu0 0.0
      %587 = vmatpush2.msra.mxu0 0.0
      %588 = vmatprep.subr.mxu0 0.0
      %589 = vmatpush2.msra.mxu0 0.0
      %590 = vmatprep.subr.mxu0 0.0
      %591 = vmatpush2.msra.mxu0 0.0
      %592 = vmatprep.subr.mxu0 0.0
      %593 = vmatpush2.msra.mxu0 0.0
      %594 = vmatprep.subr.mxu0 0.0
      %595 = vmatpush2.msra.mxu0 0.0
      %596 = vmatprep.mubr.f32.mxu0 0.0
      %597 = vmatmul.mubr.f32.gmra.mxu0 %v505
      %v598 = vpop.f32.mrf.mxu0
      %v599 = vadd.f32 %v530, %v598
      %v600 = vpop.f32.mrf.mxu0
      %601 = vmatprep.mubr.f32.mxu0 0.0
      %602 = vmatmul.mubr.f32.gmra.mxu0 %v506
      %v603 = vpop.f32.mrf.mxu0
      %v604 = vadd.f32 %v530, %v603
      %v605 = vpop.f32.mrf.mxu0
      %606 = vmatprep.mubr.f32.mxu0 0.0
      %607 = vmatmul.mubr.f32.gmra.mxu0 %v507
      %v608 = vpop.f32.mrf.mxu0
      %v609 = vadd.f32 %v530, %v608
      %v610 = vpop.f32.mrf.mxu0
      %611 = vmatprep.mubr.f32.mxu0 0.0
      %612 = vmatmul.mubr.f32.gmra.mxu0 %v508
      %v613 = vpop.f32.mrf.mxu0
      %v614 = vadd.f32 %v530, %v613
      %v615 = vpop.f32.mrf.mxu0
      %616 = vdwg.mxu0
      %vm617 = vcmask 64512
      %618 = vst.msk [vmem:[%s280] sm:$0xff] %vm617, %v599
      %619 = vst.msk [vmem:[%s280 + $0x8] sm:$0xff] %vm617, %v604
      %620 = vst.msk [vmem:[%s280 + $0x10] sm:$0xff] %vm617, %v609
      %621 = vst.msk [vmem:[%s280 + $0x18] sm:$0xff] %vm617, %v614
      %s622 = smul.u32 4, %s18
      %p623 = scmp.lt.s32.totalorder %s622, 7
      %s624 = scalar_select %p623, %s622, 7
      %s625 = smul.addr %s624, 8
      %s626 = scalar_lea.vmem %s7, %s625
      // Predicated region
      $region49: #{tpu_custom_call.1} parent=47 // pred_check
        %p627 = pneg %p188
      $region50: #{tpu_custom_call.1} parent=47 // pred_check_branch
        %629 = sbr.rel (%p627) target = $region52
      $region51: #{tpu_custom_call.1} parent=47 // pred_region
        %s630 = smul.u32 4, %s18
      $region52: #{tpu_custom_call.1} parent=47 // pred_fallthru
        _
    $region48: #{tpu_custom_call.1} parent=5 // pred_fallthru
      _
    %p631 = scmp.le.s32.totalorder 2, %s13
    // Predicated region
    $region53: #{tpu_custom_call.1} parent=5 // pred_check
      %p632 = pneg %p631
    $region54: #{tpu_custom_call.1} parent=5 // pred_check_branch
      %634 = sbr.rel (%p632) target = $region56
    $region55: #{tpu_custom_call.1} parent=5 // pred_region
      %s635 = ssub.s32 %s13, 2
      // Predicated region
      $region57: #{tpu_custom_call.1} parent=55 // pred_check
        %p636 = pneg %p194
      $region58: #{tpu_custom_call.1} parent=55 // pred_check_branch
        %638 = sbr.rel (%p636) target = $region60
      $region59: #{tpu_custom_call.1} parent=55 // pred_region
        %s639 = smul.u32 4, %s19
        %p640 = scmp.lt.s32.totalorder %s639, 7
        %s641 = scalar_select %p640, %s639, 7
        %s642 = smul.addr %s641, 8
        %s643 = scalar_lea.vmem %s7, %s642
      $region60: #{tpu_custom_call.1} parent=55 // pred_fallthru
        _
    $region56: #{tpu_custom_call.1} parent=5 // pred_fallthru
      _
  $region6: #{tpu_custom_call.1} parent=0 // loop_footer
    %s17 = sadd.s32 1, %s13
  $region7: #{tpu_custom_call.1} parent=0 // loop_footer_branch
    %12 = sbr.rel target = $region3
  $region8: #{tpu_custom_call.1} parent=0 // loop_exit
    _

</llo_original>
